<compile_context>
chip_gen: v7x
topology: tpu7x:2x2x1
jax: 0.10.0
libtpu: 0.0.40
codegen_flags: <defaults>
</compile_context>

<pallas_src>
import math

import jax
import jax.numpy as jnp
from jax.experimental import pallas as pl
from jax.experimental.pallas import tpu as pltpu


def _attention_kernel(x_ref, w_ref, b_ref, gamma_ref, beta_ref, sum_ref, att_ref):
    """One grid step processes a (TB, L, H) slab of batches."""
    w = w_ref[...].astype(jnp.float32)                 # (1, H)
    bias = b_ref[0]                                    # f32 scalar (SMEM)

    # --- pass 1 over the slab: scores, lane-dense (TB, L) -------------------
    # score[b, l] = sum_h x[b, l, h] * w[h] + bias. VPU multiply + XLU lane
    # reduce; the upcast fuses into this pass (no pinned f32 copy of x).
    score = jnp.sum(x_ref[...].astype(jnp.float32) * w[None, :, :], axis=-1) + bias
    score = jnp.maximum(score, jnp.float32(0.0))       # ReLU

    # numerically-stabilized softmax stats over the sequence (lane) axis
    m = jnp.max(score, axis=-1, keepdims=True)
    e = jnp.exp(score - m)                             # (TB, L) unnormalized
    denom = jnp.sum(e, axis=-1, keepdims=True)         # (TB, 1)

    # exact per-row reciprocal is only TB elements; keeps att bit-accurate
    att = e * (jnp.float32(1.0) / denom)               # (TB, L) lane-dense

    # --- pass 2 over the slab: weighted pooling with UNNORMALIZED weights ---
    # second independent read of x_ref so the upcast fuses here too.
    s_un = jnp.sum(x_ref[...].astype(jnp.float32) * e[:, :, None], axis=1)   # (TB, H)

    # fold softmax normalization (EUP approx reciprocal on (TB,1), error
    # cancels through LayerNorm) and the 1/sqrt(L) scale into one multiply.
    seq_len = x_ref.shape[1]
    scale = pl.reciprocal(denom, approx=True) * jnp.float32(1.0 / math.sqrt(seq_len))
    s = s_un * scale                                   # (TB, H)

    # LayerNorm over H (eps = 1e-5, affine)
    mu = jnp.mean(s, axis=-1, keepdims=True)
    var = jnp.mean((s - mu) * (s - mu), axis=-1, keepdims=True)
    normed = (s - mu) * jax.lax.rsqrt(var + jnp.float32(1e-5))
    out = normed * gamma_ref[...].astype(jnp.float32) + beta_ref[...].astype(jnp.float32)

    sum_ref[...] = out.astype(sum_ref.dtype)           # (TB, H)
    att_ref[...] = att.astype(att_ref.dtype)           # (TB, L) unmasked lane-dense store


def _cdiv(a, b):
    return -(-a // b)


def _round_up(a, m):
    return _cdiv(a, m) * m


def _sublane_multiple(dtype):
    """Sublane alignment for the batch tile: 8 rows per vreg at 32-bit,
    16 for bf16/fp16, 32 for int8/fp8 (packed sublanes)."""
    return 8 * max(1, 4 // jnp.dtype(dtype).itemsize)


def _choose_batch_tiling(B, L, H, x_dtype):
    """Return (TB, B_pad, grid_steps, vmem_limit_bytes).

    Generation-aware: per-input-tile budget leaves headroom for the x2
    double-buffered input, in-kernel f32 intermediates and the small
    outputs. Whole batch in one step if it fits (best on single-TC v5e and
    for small inputs); otherwise a sublane-aligned TB with B padded so the
    grid divides evenly, preferring an even step count (v7x has 2 TCs).
    """
    itemsize = jnp.dtype(x_dtype).itemsize
    try:
        info = pltpu.get_tpu_info()
        vmem_cap = int(getattr(info, "vmem_capacity_bytes", 64 * 1024 * 1024))
    except Exception:  # pragma: no cover - conservative fallback off-TPU
        vmem_cap = 64 * 1024 * 1024

    # 128-MiB chips (v5e/v6e): 16 MiB tile, 96 MiB limit.
    # 64-MiB v7x: 8 MiB tile, 48 MiB limit.
    tile_budget = min(16 * 1024 * 1024, vmem_cap // 8)
    vmem_limit = min(96 * 1024 * 1024, (vmem_cap * 3) // 4)

    per_batch_bytes = max(1, L * H * itemsize)
    align = _sublane_multiple(x_dtype)

    if B * per_batch_bytes <= tile_budget:
        return B, B, 1, vmem_limit

    # TODO(synk): add an L-tiled online-softmax variant (running max/denom over
    # an inner grid axis) for sequences where even a TB=align tile is too big.
    tb = max(align, (tile_budget // per_batch_bytes) // align * align)
    steps = _cdiv(B, tb)
    if steps > 1 and steps % 2 == 1:
        # shrink TB (still sublane-aligned) to reach an even step count so the
        # "parallel" axis shards evenly across v7x's two TensorCores.
        alt_tb = max(align, _round_up(_cdiv(B, steps + 1), align))
        alt_steps = _cdiv(B, alt_tb)
        if alt_steps % 2 == 0:
            tb, steps = alt_tb, alt_steps
    b_pad = steps * tb
    return tb, b_pad, steps, vmem_limit


def attention_forward(embding, w, b, gamma, beta):
    """embding: (B, L, H). Returns (sum_: (B, H) f32, att_rate: (B, L, 1) f32)."""
    B, L, H = embding.shape
    w2 = w.reshape(1, H).astype(jnp.float32)           # nn.Linear(H, 1).weight
    b1 = b.reshape(1).astype(jnp.float32)              # bias -> SMEM scalar
    g2 = gamma.reshape(1, H).astype(jnp.float32)       # LayerNorm gamma
    be2 = beta.reshape(1, H).astype(jnp.float32)       # LayerNorm beta

    TB, B_pad, steps, vmem_limit = _choose_batch_tiling(B, L, H, embding.dtype)

    x = embding
    if B_pad != B:
        # pad so the grid divides evenly with a sublane-aligned TB; padded rows
        # produce finite garbage (sliced off below), no NaNs.
        x = jnp.pad(embding, ((0, B_pad - B), (0, 0), (0, 0)))

    grid_spec = pltpu.PrefetchScalarGridSpec(
        num_scalar_prefetch=0,
        grid=(steps,),
        in_specs=[
            pl.BlockSpec((TB, L, H), lambda i: (i, 0, 0)),          # embding slab
            pl.BlockSpec((1, H), lambda i: (0, 0)),                 # linear weight
            pl.BlockSpec(memory_space=pltpu.MemorySpace.SMEM),      # linear bias (scalar)
            pl.BlockSpec((1, H), lambda i: (0, 0)),                 # layernorm gamma
            pl.BlockSpec((1, H), lambda i: (0, 0)),                 # layernorm beta
        ],
        out_specs=[
            pl.BlockSpec((TB, H), lambda i: (i, 0)),                # sum_
            pl.BlockSpec((TB, L), lambda i: (i, 0)),                # att (lane-dense)
        ],
    )

    out_shapes = (
        jax.ShapeDtypeStruct((B_pad, H), jnp.float32),
        jax.ShapeDtypeStruct((B_pad, L), jnp.float32),
    )

    sum_, att = pl.pallas_call(
        _attention_kernel,
        grid_spec=grid_spec,
        out_shape=out_shapes,
        compiler_params=pltpu.CompilerParams(
            dimension_semantics=("parallel",),
            vmem_limit_bytes=int(vmem_limit),
        ),
    )(x, w2, b1, g2, be2)

    if B_pad != B:
        sum_ = sum_[:B]
        att = att[:B]
    # Reshape the lane-dense (B, L) attention back to the module's (B, L, 1).
    return sum_, att.reshape(B, L, 1)


def attention_reference(embding, w, b, gamma, beta):
    """Pure-JAX reference matching the PyTorch forward."""
    B, L, H = embding.shape
    rate = embding @ w.reshape(H, 1) + b.reshape(1, 1)         # (B, L, 1)
    rate = jnp.maximum(rate, 0.0)
    att = jax.nn.softmax(rate, axis=1)
    s = jnp.sum(embding * att, axis=1) / math.sqrt(L)          # (B, H)
    mu = jnp.mean(s, axis=-1, keepdims=True)
    var = jnp.mean((s - mu) ** 2, axis=-1, keepdims=True)
    s = (s - mu) / jnp.sqrt(var + 1e-5) * gamma + beta
    return s, att


if __name__ == "__main__":
    B, L, H = 2, 8, 32  # batch, seq, hidden_dim

    key = jax.random.PRNGKey(0)
    k_x, k_w, k_b, k_g, k_be = jax.random.split(key, 5)

    embding = jax.random.normal(k_x, (B, L, H), dtype=jnp.float32)
    # Deterministic synthetic parameters (shapes match nn.Linear(H,1) / nn.LayerNorm(H)).
    w = jax.random.normal(k_w, (H,), dtype=jnp.float32) * (1.0 / math.sqrt(H))
    b = jax.random.normal(k_b, (1,), dtype=jnp.float32) * 0.1
    gamma = jnp.ones((H,), dtype=jnp.float32) + 0.01 * jax.random.normal(k_g, (H,))
    beta = 0.01 * jax.random.normal(k_be, (H,), dtype=jnp.float32)
    # NOTE: the nn.Embedding(500, hidden_dim) parameter `ll` is unused in forward, so omitted.

    sum_out, att_out = attention_forward(embding, w, b, gamma, beta)
    sum_out = jax.block_until_ready(sum_out)
    att_out = jax.block_until_ready(att_out)

    ref_sum, ref_att = attention_reference(embding, w, b, gamma, beta)
    assert jnp.allclose(sum_out, ref_sum, atol=1e-4, rtol=1e-4)
    assert jnp.allclose(att_out, ref_att, atol=1e-5, rtol=1e-5)

    print("KERNEL_OK")
</pallas_src>

<mosaic_0001>
module attributes {stable_mosaic.version = 11 : i64} {
  func.func @_attention_kernel(%arg0: i32, %arg1: memref<2x8x32xf32, #tpu.memory_space<vmem>>, %arg2: memref<1x32xf32, #tpu.memory_space<vmem>>, %arg3: memref<1xf32, #tpu.memory_space<smem>>, %arg4: memref<1x32xf32, #tpu.memory_space<vmem>>, %arg5: memref<1x32xf32, #tpu.memory_space<vmem>>, %arg6: memref<2x32xf32, #tpu.memory_space<vmem>>, %arg7: memref<2x8xf32, #tpu.memory_space<vmem>>) attributes {dimension_semantics = [#tpu.dimension_semantics<parallel>], iteration_bounds = array<i64: 1>, scalar_prefetch = 0 : i64, scratch_operands = 0 : i64, tpu.core_type = #tpu.core_type<tc>, window_params = [{transform_indices = @transform_0, window_bounds = array<i64: 2, 8, 32>}, {pipeline_mode = #tpu.pipeline_mode<synchronous>, transform_indices = @transform_1, window_bounds = array<i64: 1, 32>}, {transform_indices = @transform_2, window_bounds = array<i64: 1>}, {pipeline_mode = #tpu.pipeline_mode<synchronous>, transform_indices = @transform_3, window_bounds = array<i64: 1, 32>}, {pipeline_mode = #tpu.pipeline_mode<synchronous>, transform_indices = @transform_4, window_bounds = array<i64: 1, 32>}, {transform_indices = @transform_5, window_bounds = array<i64: 2, 32>}, {transform_indices = @transform_6, window_bounds = array<i64: 2, 8>}]} {
    %c0 = arith.constant 0 : index
    %c0_0 = arith.constant 0 : index
    %0 = vector.load %arg2[%c0, %c0_0] : memref<1x32xf32, #tpu.memory_space<vmem>>, vector<1x32xf32>
    %c0_1 = arith.constant 0 : index
    %1 = memref.load %arg3[%c0_1] : memref<1xf32, #tpu.memory_space<smem>>
    %c0_2 = arith.constant 0 : index
    %c0_3 = arith.constant 0 : index
    %c0_4 = arith.constant 0 : index
    %2 = vector.load %arg1[%c0_2, %c0_3, %c0_4] : memref<2x8x32xf32, #tpu.memory_space<vmem>>, vector<2x8x32xf32>
    %3 = vector.shape_cast %0 : vector<1x32xf32> to vector<1x1x32xf32>
    %4 = vector.broadcast %3 : vector<1x1x32xf32> to vector<2x8x32xf32>
    %5 = arith.mulf %2, %4 : vector<2x8x32xf32>
    %cst = arith.constant dense<0.000000e+00> : vector<2x8xf32>
    %6 = vector.multi_reduction <add>, %5, %cst [2] : vector<2x8x32xf32> to vector<2x8xf32>
    %7 = vector.broadcast %1 : f32 to vector<2x8xf32>
    %8 = arith.addf %6, %7 : vector<2x8xf32>
    %cst_5 = arith.constant 0.000000e+00 : f32
    %9 = vector.broadcast %cst_5 : f32 to vector<2x8xf32>
    %10 = arith.maximumf %8, %9 : vector<2x8xf32>
    %cst_6 = arith.constant dense<0xFF800000> : vector<2xf32>
    %11 = vector.multi_reduction <maximumf>, %10, %cst_6 [1] : vector<2x8xf32> to vector<2xf32>
    %12 = vector.shape_cast %11 : vector<2xf32> to vector<2x1xf32>
    %13 = vector.broadcast %12 : vector<2x1xf32> to vector<2x8xf32>
    %14 = arith.subf %10, %13 : vector<2x8xf32>
    %15 = math.exp %14 : vector<2x8xf32>
    %cst_7 = arith.constant dense<0.000000e+00> : vector<2xf32>
    %16 = vector.multi_reduction <add>, %15, %cst_7 [1] : vector<2x8xf32> to vector<2xf32>
    %17 = vector.shape_cast %16 : vector<2xf32> to vector<2x1xf32>
    %cst_8 = arith.constant 1.000000e+00 : f32
    %18 = vector.broadcast %cst_8 : f32 to vector<2x1xf32>
    %19 = arith.divf %18, %17 : vector<2x1xf32>
    %20 = vector.broadcast %19 : vector<2x1xf32> to vector<2x8xf32>
    %21 = arith.mulf %15, %20 : vector<2x8xf32>
    %c0_9 = arith.constant 0 : index
    %c0_10 = arith.constant 0 : index
    %c0_11 = arith.constant 0 : index
    %22 = vector.load %arg1[%c0_9, %c0_10, %c0_11] : memref<2x8x32xf32, #tpu.memory_space<vmem>>, vector<2x8x32xf32>
    %23 = vector.shape_cast %15 : vector<2x8xf32> to vector<2x8x1xf32>
    %24 = vector.broadcast %23 : vector<2x8x1xf32> to vector<2x8x32xf32>
    %25 = arith.mulf %22, %24 : vector<2x8x32xf32>
    %cst_12 = arith.constant dense<0.000000e+00> : vector<2x32xf32>
    %26 = vector.multi_reduction <add>, %25, %cst_12 [1] : vector<2x8x32xf32> to vector<2x32xf32>
    %27 = tpu.reciprocal %17 {approx = true} : vector<2x1xf32> -> vector<2x1xf32>
    %cst_13 = arith.constant 0.353553385 : f32
    %28 = vector.broadcast %cst_13 : f32 to vector<2x1xf32>
    %29 = arith.mulf %27, %28 : vector<2x1xf32>
    %30 = vector.broadcast %29 : vector<2x1xf32> to vector<2x32xf32>
    %31 = arith.mulf %26, %30 : vector<2x32xf32>
    %cst_14 = arith.constant dense<0.000000e+00> : vector<2xf32>
    %32 = vector.multi_reduction <add>, %31, %cst_14 [1] : vector<2x32xf32> to vector<2xf32>
    %33 = vector.shape_cast %32 : vector<2xf32> to vector<2x1xf32>
    %cst_15 = arith.constant 3.200000e+01 : f32
    %34 = vector.broadcast %cst_15 : f32 to vector<2x1xf32>
    %35 = arith.divf %33, %34 : vector<2x1xf32>
    %36 = vector.broadcast %35 : vector<2x1xf32> to vector<2x32xf32>
    %37 = arith.subf %31, %36 : vector<2x32xf32>
    %38 = vector.broadcast %35 : vector<2x1xf32> to vector<2x32xf32>
    %39 = arith.subf %31, %38 : vector<2x32xf32>
    %40 = arith.mulf %37, %39 : vector<2x32xf32>
    %cst_16 = arith.constant dense<0.000000e+00> : vector<2xf32>
    %41 = vector.multi_reduction <add>, %40, %cst_16 [1] : vector<2x32xf32> to vector<2xf32>
    %42 = vector.shape_cast %41 : vector<2xf32> to vector<2x1xf32>
    %cst_17 = arith.constant 3.200000e+01 : f32
    %43 = vector.broadcast %cst_17 : f32 to vector<2x1xf32>
    %44 = arith.divf %42, %43 : vector<2x1xf32>
    %45 = vector.broadcast %35 : vector<2x1xf32> to vector<2x32xf32>
    %46 = arith.subf %31, %45 : vector<2x32xf32>
    %cst_18 = arith.constant 9.99999974E-6 : f32
    %47 = vector.broadcast %cst_18 : f32 to vector<2x1xf32>
    %48 = arith.addf %44, %47 : vector<2x1xf32>
    %49 = math.rsqrt %48 : vector<2x1xf32>
    %50 = vector.broadcast %49 : vector<2x1xf32> to vector<2x32xf32>
    %51 = arith.mulf %46, %50 : vector<2x32xf32>
    %c0_19 = arith.constant 0 : index
    %c0_20 = arith.constant 0 : index
    %52 = vector.load %arg4[%c0_19, %c0_20] : memref<1x32xf32, #tpu.memory_space<vmem>>, vector<1x32xf32>
    %53 = vector.broadcast %52 : vector<1x32xf32> to vector<2x32xf32>
    %54 = arith.mulf %51, %53 : vector<2x32xf32>
    %c0_21 = arith.constant 0 : index
    %c0_22 = arith.constant 0 : index
    %55 = vector.load %arg5[%c0_21, %c0_22] : memref<1x32xf32, #tpu.memory_space<vmem>>, vector<1x32xf32>
    %56 = vector.broadcast %55 : vector<1x32xf32> to vector<2x32xf32>
    %57 = arith.addf %54, %56 : vector<2x32xf32>
    %c0_23 = arith.constant 0 : index
    %c0_24 = arith.constant 0 : index
    %58 = vector.load %arg6[%c0_23, %c0_24] : memref<2x32xf32, #tpu.memory_space<vmem>>, vector<2x32xf32>
    tpu.vector_store %arg6[%c0_23, %c0_24], %57 {strides = array<i32>} : memref<2x32xf32, #tpu.memory_space<vmem>>, vector<2x32xf32>,
    %c0_25 = arith.constant 0 : index
    %c0_26 = arith.constant 0 : index
    %59 = vector.load %arg7[%c0_25, %c0_26] : memref<2x8xf32, #tpu.memory_space<vmem>>, vector<2x8xf32>
    tpu.vector_store %arg7[%c0_25, %c0_26], %21 {strides = array<i32>} : memref<2x8xf32, #tpu.memory_space<vmem>>, vector<2x8xf32>,
    return
  }
  func.func @transform_0(%arg0: i32) -> (i32, i32, i32) {
    %c0_i32 = arith.constant 0 : i32
    %c0_i32_0 = arith.constant 0 : i32
    %c0_i32_1 = arith.constant 0 : i32
    return %arg0, %c0_i32, %c0_i32_0 : i32, i32, i32
  }
  func.func @transform_1(%arg0: i32) -> (i32, i32) {
    %c0_i32 = arith.constant 0 : i32
    %c0_i32_0 = arith.constant 0 : i32
    %c0_i32_1 = arith.constant 0 : i32
    return %c0_i32, %c0_i32_0 : i32, i32
  }
  func.func @transform_2(%arg0: i32) -> i32 {
    %c0_i32 = arith.constant 0 : i32
    %c0_i32_0 = arith.constant 0 : i32
    return %c0_i32 : i32
  }
  func.func @transform_3(%arg0: i32) -> (i32, i32) {
    %c0_i32 = arith.constant 0 : i32
    %c0_i32_0 = arith.constant 0 : i32
    %c0_i32_1 = arith.constant 0 : i32
    return %c0_i32, %c0_i32_0 : i32, i32
  }
  func.func @transform_4(%arg0: i32) -> (i32, i32) {
    %c0_i32 = arith.constant 0 : i32
    %c0_i32_0 = arith.constant 0 : i32
    %c0_i32_1 = arith.constant 0 : i32
    return %c0_i32, %c0_i32_0 : i32, i32
  }
  func.func @transform_5(%arg0: i32) -> (i32, i32) {
    %c0_i32 = arith.constant 0 : i32
    %c0_i32_0 = arith.constant 0 : i32
    return %arg0, %c0_i32 : i32, i32
  }
  func.func @transform_6(%arg0: i32) -> (i32, i32) {
    %c0_i32 = arith.constant 0 : i32
    %c0_i32_0 = arith.constant 0 : i32
    return %arg0, %c0_i32 : i32, i32
  }
}

</mosaic_0001>

<llo_original>
// kernel: tpu_custom_call.1
$region0: #{tpu_custom_call.1}
  #allocation0 [shape = 'u32[]', space=smem, size = 0x4, offset = 0x4, fixed_abs, tag = 'smem constant byte address 0x4 - core index']
  #allocation1 [shape = 'u32[144,128]{1,0:T(1,128)}', space=vmem, size = 0x12000, scoped, tag = 'internal scratch']
  #allocation2 [shape = 'f32[1]{0:T(128)S(6)}', space=smem, size = 0x200, scoped, tag = 'scoped memory for tpu_custom_call.1']
  %s0 = inlined_call_operand.hbm [shape: f32[2,8,32], index: 0, kind: input, shape index: {}]
  %s1 = inlined_call_operand.vmem [shape: f32[1,32], index: 1, kind: input, shape index: {}]
  %s2 = inlined_call_operand.<no memory space> [shape: f32[1], index: 2, kind: input, shape index: {}]
  %s3 = inlined_call_operand.vmem [shape: f32[1,32], index: 3, kind: input, shape index: {}]
  %s4 = inlined_call_operand.vmem [shape: f32[1,32], index: 4, kind: input, shape index: {}]
  %s5 = inlined_call_operand.hbm [shape: f32[2,32], index: 5, kind: output, shape index: {0}]
  %s6 = inlined_call_operand.hbm [shape: f32[2,8], index: 6, kind: output, shape index: {1}]
  %7 = xla_tuple %s5, %s6
  %s8 = sld [smem:[#allocation0]]
  $region42: #{tpu_custom_call.1} parent=0
    _
  %s10 = ssub.s32 1, %s8
  %s11 = scalar_select 0, %s10, %s8
  %12 = sst [smem:[#allocation2]] %s2
  $region1: #{tpu_custom_call.1} parent=0
    #allocation3 [shape = 'u8[8192]{0}', space=vmem, size = 0x2000, scoped, tag = 'input window, operand 0, single buffered']
    #allocation4 [shape = 's32[1]{0}', space=sflag, size = 0x4, scoped, tag = 'scoped memory for tpu_custom_call.1']
    #allocation5 [shape = 's32[1]{0}', space=sflag, size = 0x4, scoped, tag = 'scoped memory for tpu_custom_call.1']
    #allocation6 [shape = 'u8[1024]{0}', space=vmem, size = 0x400, scoped, tag = 'output window, operand 0, single buffered']
    #allocation7 [shape = 'u8[1024]{0}', space=vmem, size = 0x400, scoped, tag = 'output window, operand 1, single buffered']
    #allocation8 [shape = 's32[1]{0}', space=sflag, size = 0x4, scoped, tag = 'scoped memory for tpu_custom_call.1']
    %13 = vsyncpa [#allocation4], 0
    %14 = vsyncpa [#allocation5], 0
    %15 = vsyncpa [#allocation8], 0
    // Predicated region
    $region2: #{tpu_custom_call.1} parent=1 // pred_check
      _
    $region3: #{tpu_custom_call.1} parent=1 // pred_check_branch
      %17 = sbr.rel (0) target = $region5
    $region4: #{tpu_custom_call.1} parent=1 // pred_region
      %s19 = ssub.s32 256, 256
      %20 = vsyncadd [#allocation4], %s19
      %s21 = sshll.u32 [#allocation3], 4
      %s22 = int_to_ptr.vmem [resolvable:$true] %s21
      %27 = dma.hbm_to_vmem [thread:$0]  %s0, 256, %s22, [#allocation4], 128, 128, 8
    $region5: #{tpu_custom_call.1} parent=1 // pred_fallthru
      _
    // Predicated region
    $region6: #{tpu_custom_call.1} parent=1 // pred_check
      _
    $region7: #{tpu_custom_call.1} parent=1 // pred_check_branch
      %29 = sbr.rel (0) target = $region9
    $region8: #{tpu_custom_call.1} parent=1 // pred_region
      _
    $region9: #{tpu_custom_call.1} parent=1 // pred_fallthru
      _
    // Predicated region
    $region10: #{tpu_custom_call.1} parent=1 // pred_check
      _
    $region11: #{tpu_custom_call.1} parent=1 // pred_check_branch
      %31 = sbr.rel (0) target = $region13
    $region12: #{tpu_custom_call.1} parent=1 // pred_region
      _
    $region13: #{tpu_custom_call.1} parent=1 // pred_fallthru
      _
    // Predicated region
    $region14: #{tpu_custom_call.1} parent=1 // pred_check
      _
    $region15: #{tpu_custom_call.1} parent=1 // pred_check_branch
      %33 = sbr.rel (0) target = $region17
    $region16: #{tpu_custom_call.1} parent=1 // pred_region
      _
    $region17: #{tpu_custom_call.1} parent=1 // pred_fallthru
      _
    // Predicated region
    $region18: #{tpu_custom_call.1} parent=1 // pred_check
      _
    $region19: #{tpu_custom_call.1} parent=1 // pred_check_branch
      %35 = sbr.rel (0) target = $region21
    $region20: #{tpu_custom_call.1} parent=1 // pred_region
      _
    $region21: #{tpu_custom_call.1} parent=1 // pred_fallthru
      _
    // Predicated region
    $region22: #{tpu_custom_call.1} parent=1 // pred_check
      _
    $region23: #{tpu_custom_call.1} parent=1 // pred_check_branch
      %37 = sbr.rel (0) target = $region25
    $region24: #{tpu_custom_call.1} parent=1 // pred_region
      %38 = dma.done [#allocation4], 256
    $region25: #{tpu_custom_call.1} parent=1 // pred_fallthru
      _
    %v39 = vld [vmem:[%s1] sm:$0x1]
    %s40 = sld [smem:[#allocation2]]
    %v41 = vld [vmem:[#allocation3] sm:$0xff]
    %v42 = vld [vmem:[#allocation3 + $0x8] sm:$0xff]
    %v44 = vlaneseq
    %v45 = vshrl.u32 %v44, 7
    %v46 = vsub.s32 0, %v45
    %v47 = vrot.slane %v39, %v46
    %v49 = vmul.f32 %v41, %v47
    %v50 = vmul.f32 %v42, %v47
    %vm51 = vcmask 261120
    %v52 = vsel %vm51, %v49, 0.0
    %53 = vadd.xlane.f32.xlu0 %v52
    %v54 = vpop.xlane.xlu0 %53
    %v55 = vsel %vm51, %v50, 0.0
    %56 = vadd.xlane.f32.xlu0 %v55
    %v57 = vpop.xlane.xlu0 %56
    %v58 = vstv %s40
    %v59 = vadd.f32 %v54, %v58
    %v60 = vadd.f32 %v57, %v58
    %v61 = vmax.f32 %v59, 0.0
    %v62 = vmax.f32 %v60, 0.0
    %v65 = vlaneseq
    %v66 = vand.u32 %v65, 127
    %v67 = vlaneseq
    %v68 = vshrl.u32 %v67, 7
    %v69 = vsub.s32 %v66, %v68
    %v70 = vrot.slane %v61, %v69
    %v71 = vlaneseq
    %v72 = vshrl.u32 %v71, 7
    %v73 = vsub.s32 %v66, %v72
    %v74 = vrot.slane %v62, %v73
    %vm75 = vcmask 1041409
    %v76 = vsel %vm75, %v74, %v70
    %vm78 = vcmask 58368
    %v79 = vsel %vm78, %v76, -inf
    %80 = vmax.xlane.f32.xlu0 %v79
    %v81 = vpop.xlane.xlu0 %80
    %v83 = vlaneseq
    %v84 = vshrl.u32 %v83, 7
    %v85 = vsub.s32 0, %v84
    %v86 = vrot.slane %v81, %v85
    %v87 = vlaneseq
    %v88 = vshrl.u32 %v87, 7
    %v89 = vsub.s32 1, %v88
    %v90 = vrot.slane %v81, %v89
    %v93 = vsub.f32 %v61, %v86
    %v94 = vsub.f32 %v62, %v90
    %v95 = vmul.f32 %v93, 1.442695
    %v96 = vpow.pop %v95
    %v97 = vmul.f32 %v94, 1.442695
    %v98 = vpow.pop %v97
    %101 = vset.pattern.permute.xlu0 0
    %102 = vperm.xlu0 %101, %v96
    %v103 = vpop.permute.xlu0 %102
    %104 = vset.pattern.permute.xlu0 0
    %105 = vperm.xlu0 %104, %v98
    %v106 = vpop.permute.xlu0 %105
    %v107 = vlaneseq
    %v108 = vshrl.u32 %v107, 7
    %v109 = vsub.s32 %v66, %v108
    %v110 = vrot.slane %v103, %v109
    %v111 = vlaneseq
    %v112 = vshrl.u32 %v111, 7
    %v113 = vsub.s32 %v66, %v112
    %v114 = vrot.slane %v106, %v113
    %v115 = vsel %vm75, %v114, %v110
    %v117 = vsel %vm78, %v115, 0.0
    %118 = vadd.xlane.f32.xlu0 %v117
    %v119 = vpop.xlane.xlu0 %118
    %v120 = vrcp.pop %v119
    %v121 = vmul.f32 1.0, %v120
    %v123 = vlaneseq
    %v124 = vshrl.u32 %v123, 7
    %v125 = vsub.s32 0, %v124
    %v126 = vrot.slane %v121, %v125
    %v127 = vlaneseq
    %v128 = vshrl.u32 %v127, 7
    %v129 = vsub.s32 1, %v128
    %v130 = vrot.slane %v121, %v129
    %v133 = vmul.f32 %v96, %v126
    %v134 = vmul.f32 %v98, %v130
    %v137 = vmul.f32 %v41, %v103
    %v138 = vmul.f32 %v42, %v106
    %v139 = vsel %vm51, %v137, 0.0
    %v140 = vrot.slane %v139, 4
    %v141 = vadd.f32 %v139, %v140
    %v142 = vrot.slane %v141, 2
    %v143 = vadd.f32 %v141, %v142
    %v144 = vrot.slane %v143, 1
    %v145 = vadd.f32 %v143, %v144
    %v146 = vsel %vm51, %v138, 0.0
    %v147 = vrot.slane %v146, 4
    %v148 = vadd.f32 %v146, %v147
    %v149 = vrot.slane %v148, 2
    %v150 = vadd.f32 %v148, %v149
    %v151 = vrot.slane %v150, 1
    %v152 = vadd.f32 %v150, %v151
    %v153 = vrcp.pop %v119
    %v154 = vmul.f32 %v153, 0.35355338
    %v156 = vrot.slane %v154, 1
    %v159 = vmul.f32 %v145, %v154
    %v160 = vmul.f32 %v152, %v156
    %v163 = vrot.slane %v160, 7
    %v164 = vsel %vm75, %v163, %v159
    %vm166 = vcmask 254976
    %v167 = vsel %vm166, %v164, 0.0
    %168 = vadd.xlane.f32.xlu0 %v167
    %v169 = vpop.xlane.xlu0 %168
    %v170 = vrcp.pop 32.0
    %v171 = vmul.f32 %v169, %v170
    %v173 = vrot.slane %v171, 1
    %v176 = vsub.f32 %v159, %v171
    %v177 = vsub.f32 %v160, %v173
    %v178 = vmul.f32 %v176, %v176
    %v179 = vmul.f32 %v177, %v177
    %v182 = vrot.slane %v179, 7
    %v183 = vsel %vm75, %v182, %v178
    %v185 = vsel %vm166, %v183, 0.0
    %186 = vadd.xlane.f32.xlu0 %v185
    %v187 = vpop.xlane.xlu0 %186
    %v188 = vmul.f32 %v187, %v170
    %v189 = vadd.f32 %v188, 1e-05
    %v190 = vrsqrt.pop %v189
    %v192 = vrot.slane %v190, 1
    %v195 = vmul.f32 %v176, %v190
    %v196 = vmul.f32 %v177, %v192
    %v197 = vld [vmem:[%s3] sm:$0x1]
    %v199 = vlaneseq
    %v200 = vshrl.u32 %v199, 7
    %v201 = vsub.s32 0, %v200
    %v202 = vrot.slane %v197, %v201
    %v204 = vmul.f32 %v195, %v202
    %v205 = vmul.f32 %v196, %v202
    %v206 = vld [vmem:[%s4] sm:$0x1]
    %v208 = vlaneseq
    %v209 = vshrl.u32 %v208, 7
    %v210 = vsub.s32 0, %v209
    %v211 = vrot.slane %v206, %v210
    %v213 = vadd.f32 %v204, %v211
    %v214 = vadd.f32 %v205, %v211
    %v217 = vrot.slane %v214, 7
    %v218 = vsel %vm75, %v217, %v213
    %220 = vst.msk [vmem:[#allocation6] sm:$0x3] %vm166, %v218
    %223 = vset.pattern.permute.xlu0 0
    %224 = vperm.xlu0 %223, %v133
    %v225 = vpop.permute.xlu0 %224
    %226 = vset.pattern.permute.xlu0 0
    %227 = vperm.xlu0 %226, %v134
    %v228 = vpop.permute.xlu0 %227
    %v229 = vlaneseq
    %v230 = vshrl.u32 %v229, 7
    %v231 = vsub.s32 %v66, %v230
    %v232 = vrot.slane %v225, %v231
    %v233 = vlaneseq
    %v234 = vshrl.u32 %v233, 7
    %v235 = vsub.s32 %v66, %v234
    %v236 = vrot.slane %v228, %v235
    %v237 = vsel %vm75, %v236, %v232
    %239 = vst.msk [vmem:[#allocation7] sm:$0x3] %vm78, %v237
    // Predicated region
    $region26: #{tpu_custom_call.1} parent=1 // pred_check
      _
    $region27: #{tpu_custom_call.1} parent=1 // pred_check_branch
      %241 = sbr.rel (0) target = $region29
    $region28: #{tpu_custom_call.1} parent=1 // pred_region
      %s243 = ssub.s32 32, 32
      %244 = vsyncadd [#allocation5], %s243
      %s246 = sshll.u32 [#allocation6], 4
      %s247 = int_to_ptr.vmem [resolvable:$true] %s246
      %249 = dma.vmem_to_hbm [thread:$0]  %s247, 32, %s5, [#allocation5]
    $region29: #{tpu_custom_call.1} parent=1 // pred_fallthru
      _
    // Predicated region
    $region30: #{tpu_custom_call.1} parent=1 // pred_check
      _
    $region31: #{tpu_custom_call.1} parent=1 // pred_check_branch
      %251 = sbr.rel (0) target = $region33
    $region32: #{tpu_custom_call.1} parent=1 // pred_region
      %s253 = ssub.s32 32, 32
      %254 = vsyncadd [#allocation8], %s253
      %s256 = sshll.u32 [#allocation7], 4
      %s257 = int_to_ptr.vmem [resolvable:$true] %s256
      %259 = dma.vmem_to_hbm [thread:$0]  %s257, 32, %s6, [#allocation8]
    $region33: #{tpu_custom_call.1} parent=1 // pred_fallthru
      _
    // Predicated region
    $region34: #{tpu_custom_call.1} parent=1 // pred_check
      _
    $region35: #{tpu_custom_call.1} parent=1 // pred_check_branch
      %261 = sbr.rel (0) target = $region37
    $region36: #{tpu_custom_call.1} parent=1 // pred_region
      %262 = dma.done [#allocation5], 32
    $region37: #{tpu_custom_call.1} parent=1 // pred_fallthru
      _
    // Predicated region
    $region38: #{tpu_custom_call.1} parent=1 // pred_check
      _
    $region39: #{tpu_custom_call.1} parent=1 // pred_check_branch
      %264 = sbr.rel (0) target = $region41
    $region40: #{tpu_custom_call.1} parent=1 // pred_region
      %265 = dma.done [#allocation8], 32
    $region41: #{tpu_custom_call.1} parent=1 // pred_fallthru
      _
    %266 = vsyncpa [#allocation4], 1
    %267 = vsyncpa [#allocation5], 1
    %268 = vsyncpa [#allocation8], 1

</llo_original>
